<compile_context>
chip_gen: v5e
topology: v5e:2x2
jax: 0.10.0
libtpu: 0.0.40
codegen_flags: <defaults>
</compile_context>

<pallas_src>
import functools

import jax
import jax.numpy as jnp
from jax.experimental import pallas as pl
from jax.experimental.pallas import tpu as pltpu

_ACC_LANES = 128  # lane width of the running sum/max accumulators


def _channel_attention_kernel(x_ref, w1_ref, w2_ref, o_ref, sum_acc, max_acc,
                              *, true_l, tl, tail_valid):
    # x_ref:   [1, C, tl]        one batch row, one L tile (tl multiple of 128)
    # w1_ref:  [C, C_mid]        fc1 weight, pre-transposed
    # w2_ref:  [C_mid, C]        fc2 weight, pre-transposed
    # o_ref:   [1, 1, C]         gate output (written on the last L tile)
    # sum_acc: [1, C, 128] f32   lane-wise running sum  (persists across L axis)
    # max_acc: [1, C, 128] f32   lane-wise running max  (persists across L axis)
    l = pl.program_id(1)
    n_l = pl.num_programs(1)
    n_chunks = tl // _ACC_LANES
    ragged_tail = tail_valid < tl  # static

    @pl.when(l == 0)
    def _init():
        sum_acc[...] = jnp.zeros(sum_acc.shape, jnp.float32)
        max_acc[...] = jnp.full(max_acc.shape, -jnp.inf, jnp.float32)

    def chunk(k):
        lo = k * _ACC_LANES
        if not isinstance(lo, int):
            lo = pl.multiple_of(lo, _ACC_LANES)
        return x_ref[:, :, pl.ds(lo, _ACC_LANES)].astype(jnp.float32)

    def accumulate_full(n_full, s, m):
        # n_full fully-valid 128-lane chunks; pure vld + vadd/vmax (VPU).
        def body(k, carry):
            cs, cm = carry
            c = chunk(k)
            return cs + c, jnp.maximum(cm, c)

        if n_full <= 8:  # fully unrolled for small tiles
            carry = (s, m)
            for k in range(n_full):
                carry = body(k, carry)
            return carry
        return jax.lax.fori_loop(0, n_full, body, (s, m), unroll=4)

    def accumulate(valid_lanes):
        # `valid_lanes` (static int) lanes of this tile hold real data.
        s = sum_acc[...]
        m = max_acc[...]
        n_full, partial = divmod(valid_lanes, _ACC_LANES)
        s, m = accumulate_full(n_full, s, m)
        if partial:  # boundary chunk of the ragged tail: mask sum AND max
            c = chunk(n_full)
            lane = jax.lax.broadcasted_iota(jnp.int32, c.shape, 2)
            keep = lane < partial
            s = s + jnp.where(keep, c, 0.0)
            m = jnp.maximum(m, jnp.where(keep, c, -jnp.inf))
        sum_acc[...] = s
        max_acc[...] = m

    if ragged_tail:
        @pl.when(l < n_l - 1)
        def _body():
            accumulate(tl)          # interior tiles: no masking cost

        @pl.when(l == n_l - 1)
        def _tail():
            accumulate(tail_valid)  # only the tail tile pays for the mask
    else:
        accumulate(tl)

    @pl.when(l == n_l - 1)
    def _finalize():
        # Single cross-lane (XLU) reduction per batch row + tiny excitation MLP.
        avg = jnp.sum(sum_acc[...], axis=-1) * (1.0 / float(true_l))   # [1, C]
        mx = jnp.max(max_acc[...], axis=-1)                            # [1, C]
        pooled = jnp.concatenate([avg, mx], axis=0)                    # [2, C]
        w1 = w1_ref[...].astype(jnp.float32)
        w2 = w2_ref[...].astype(jnp.float32)
        h = jnp.maximum(
            jnp.dot(pooled, w1, preferred_element_type=jnp.float32), 0.0)
        y = jnp.dot(h, w2, preferred_element_type=jnp.float32)         # [2, C]
        out = jax.nn.sigmoid(y[0:1] + y[1:2])                          # [1, C]
        o_ref[...] = out[:, None, :].astype(o_ref.dtype)


def _choose_l_tile(L, C, itemsize, max_block_bytes):
    """Largest lane-dense (multiple of 128) L tile whose (C, tl) block fits the
    per-block byte budget.  No divisibility requirement: the grid uses cdiv and
    the ragged tail is masked inside the kernel."""
    lanes_needed = ((L + 127) // 128) * 128
    max_lanes = max(128, (max_block_bytes // (C * itemsize)) // 128 * 128)
    return min(lanes_needed, max_lanes)


def channel_attention(x, w1, w2, *, max_block_bytes=4 << 20, interpret=False):
    """x: [B, C, L].  w1: [C_mid, C] (squeezed fc1 Conv1d weight).
    w2: [C, C_mid] (squeezed fc2 Conv1d weight).  Returns [B, C, 1]."""
    B, C, L = x.shape
    C_mid = w1.shape[0]
    assert w1.shape == (C_mid, C) and w2.shape == (C, C_mid)

    itemsize = x.dtype.itemsize
    tl = _choose_l_tile(L, C, itemsize, max_block_bytes)
    n_l = pl.cdiv(L, tl)
    tail_valid = L - (n_l - 1) * tl          # valid lanes in the last tile

    w1_t = jnp.asarray(w1).T                 # [C, C_mid]
    w2_t = jnp.asarray(w2).T                 # [C_mid, C]

    kernel = functools.partial(
        _channel_attention_kernel, true_l=L, tl=tl, tail_valid=tail_valid)

    # Real VMEM footprint: double-buffered x block + scratch + weights + output.
    block_bytes = C * tl * itemsize
    acc_bytes = C * _ACC_LANES * 4
    vmem_need = 2 * block_bytes + 2 * acc_bytes + 8 * C * C_mid + 8 * C
    vmem_limit = int(min(48 << 20, max(vmem_need + (4 << 20), 16 << 20)))

    out = pl.pallas_call(
        kernel,
        out_shape=jax.ShapeDtypeStruct((B, 1, C), x.dtype),
        grid_spec=pltpu.PrefetchScalarGridSpec(
            num_scalar_prefetch=0,
            grid=(B, n_l),
            in_specs=[
                # x: one batch row, one lane-dense L tile per step (streamed,
                # double-buffered by the BlockSpec pipeline).
                pl.BlockSpec((1, C, tl), lambda b, l: (b, 0, l)),
                # Tiny weights: full blocks, resident across the grid.
                pl.BlockSpec((C, C_mid), lambda b, l: (0, 0)),
                pl.BlockSpec((C_mid, C), lambda b, l: (0, 0)),
            ],
            out_specs=pl.BlockSpec((1, 1, C), lambda b, l: (b, 0, 0)),
            scratch_shapes=[
                pltpu.VMEM((1, C, _ACC_LANES), jnp.float32),  # running sum
                pltpu.VMEM((1, C, _ACC_LANES), jnp.float32),  # running max
            ],
        ),
        compiler_params=pltpu.CompilerParams(
            dimension_semantics=("parallel", "arbitrary"),
            vmem_limit_bytes=vmem_limit,
        ),
        interpret=interpret,
    )(x, w1_t, w2_t)

    return out.reshape(B, C, 1)


def channel_attention_ref(x, w1, w2):
    """Pure-JAX reference matching the PyTorch ChannelAttention forward."""
    avg = jnp.mean(x, axis=-1)  # [B, C]
    mx = jnp.max(x, axis=-1)    # [B, C]

    def mlp(y):
        h = jnp.maximum(y @ w1.T, 0.0)
        return h @ w2.T

    out = jax.nn.sigmoid(mlp(avg) + mlp(mx))  # [B, C]
    return out[:, :, None]                    # [B, C, 1]


if __name__ == "__main__":
    key = jax.random.PRNGKey(0)
    kx, k1, k2, kx2 = jax.random.split(key, 4)

    # Shapes implied by the module: x = [B, in_planes, L], in_planes=62, ratio=16.
    B, C, ratio, L = 2, 62, 16, 16
    C_mid = C // ratio  # 3

    x = jax.random.normal(kx, (B, C, L), dtype=jnp.float32)
    # Conv1d(kernel_size=1, bias=False) weights, squeezed over the kernel dim.
    w1 = jax.random.normal(k1, (C_mid, C), dtype=jnp.float32) * (2.0 / C) ** 0.5
    w2 = jax.random.normal(k2, (C, C_mid), dtype=jnp.float32) * (2.0 / C_mid) ** 0.5

    # Small single-tile case (L=16 -> one 128-lane tile, 16 valid lanes).
    out = channel_attention(x, w1, w2)
    jax.block_until_ready(out)
    ref = channel_attention_ref(x, w1, w2)
    assert out.shape == (B, C, 1)
    assert jnp.allclose(out, ref, atol=1e-5, rtol=1e-5), "mismatch (single tile)"

    # Streamed multi-tile case with a ragged tail: cap the block budget so
    # L=333 becomes 3 tiles of 128 lanes, last tile with 77 valid lanes.
    L2 = 333
    x2 = jax.random.normal(kx2, (B, C, L2), dtype=jnp.float32)
    out2 = channel_attention(x2, w1, w2, max_block_bytes=C * 128 * 4)
    jax.block_until_ready(out2)
    ref2 = channel_attention_ref(x2, w1, w2)
    assert jnp.allclose(out2, ref2, atol=1e-5, rtol=1e-5), "mismatch (streamed)"

    print("KERNEL_OK")
</pallas_src>

<mosaic_0001>
module attributes {stable_mosaic.version = 11 : i64} {
  func.func @_channel_attention_kernel(%arg0: i32, %arg1: i32, %arg2: memref<1x62x128xf32, #tpu.memory_space<vmem>>, %arg3: memref<62x3xf32, #tpu.memory_space<vmem>>, %arg4: memref<3x62xf32, #tpu.memory_space<vmem>>, %arg5: memref<1x1x62xf32, #tpu.memory_space<vmem>>, %arg6: memref<1x62x128xf32, #tpu.memory_space<vmem>>, %arg7: memref<1x62x128xf32, #tpu.memory_space<vmem>>) attributes {dimension_semantics = [#tpu.dimension_semantics<parallel>, #tpu.dimension_semantics<arbitrary>], iteration_bounds = array<i64: 2, 1>, scalar_prefetch = 0 : i64, scratch_operands = 2 : i64, tpu.core_type = #tpu.core_type<tc>, window_params = [{transform_indices = @transform_0, window_bounds = array<i64: 1, 62, 128>}, {pipeline_mode = #tpu.pipeline_mode<synchronous>, transform_indices = @transform_1, window_bounds = array<i64: 62, 3>}, {pipeline_mode = #tpu.pipeline_mode<synchronous>, transform_indices = @transform_2, window_bounds = array<i64: 3, 62>}, {transform_indices = @transform_3, window_bounds = array<i64: 1, 1, 62>}]} {
    %c0_i32 = arith.constant 0 : i32
    %0 = arith.cmpi eq, %arg1, %c0_i32 : i32
    %1 = arith.extui %0 : i1 to i32
    %c0_i32_0 = arith.constant 0 : i32
    %2 = arith.cmpi ne, %1, %c0_i32_0 : i32
    scf.if %2 {
      %cst = arith.constant 0.000000e+00 : f32
      %12 = vector.broadcast %cst : f32 to vector<1x62x128xf32>
      %c0 = arith.constant 0 : index
      %c0_7 = arith.constant 0 : index
      %c0_8 = arith.constant 0 : index
      %13 = vector.load %arg6[%c0, %c0_7, %c0_8] : memref<1x62x128xf32, #tpu.memory_space<vmem>>, vector<1x62x128xf32>
      tpu.vector_store %arg6[%c0, %c0_7, %c0_8], %12 {strides = array<i32>} : memref<1x62x128xf32, #tpu.memory_space<vmem>>, vector<1x62x128xf32>,
      %cst_9 = arith.constant 0xFF800000 : f32
      %14 = vector.broadcast %cst_9 : f32 to vector<1x62x128xf32>
      %c0_10 = arith.constant 0 : index
      %c0_11 = arith.constant 0 : index
      %c0_12 = arith.constant 0 : index
      %15 = vector.load %arg7[%c0_10, %c0_11, %c0_12] : memref<1x62x128xf32, #tpu.memory_space<vmem>>, vector<1x62x128xf32>
      tpu.vector_store %arg7[%c0_10, %c0_11, %c0_12], %14 {strides = array<i32>} : memref<1x62x128xf32, #tpu.memory_space<vmem>>, vector<1x62x128xf32>,
    } else {
    }
    %c0_i32_1 = arith.constant 0 : i32
    %3 = arith.cmpi slt, %arg1, %c0_i32_1 : i32
    %4 = arith.extui %3 : i1 to i32
    %c0_i32_2 = arith.constant 0 : i32
    %5 = arith.cmpi ne, %4, %c0_i32_2 : i32
    scf.if %5 {
      %c0 = arith.constant 0 : index
      %c0_7 = arith.constant 0 : index
      %c0_8 = arith.constant 0 : index
      %12 = vector.load %arg6[%c0, %c0_7, %c0_8] : memref<1x62x128xf32, #tpu.memory_space<vmem>>, vector<1x62x128xf32>
      %c0_9 = arith.constant 0 : index
      %c0_10 = arith.constant 0 : index
      %c0_11 = arith.constant 0 : index
      %13 = vector.load %arg7[%c0_9, %c0_10, %c0_11] : memref<1x62x128xf32, #tpu.memory_space<vmem>>, vector<1x62x128xf32>
      %c0_12 = arith.constant 0 : index
      %c0_13 = arith.constant 0 : index
      %c0_14 = arith.constant 0 : index
      %14 = vector.load %arg2[%c0_12, %c0_13, %c0_14] : memref<1x62x128xf32, #tpu.memory_space<vmem>>, vector<1x62x128xf32>
      %15 = arith.addf %12, %14 : vector<1x62x128xf32>
      %16 = arith.maximumf %13, %14 : vector<1x62x128xf32>
      %c0_15 = arith.constant 0 : index
      %c0_16 = arith.constant 0 : index
      %c0_17 = arith.constant 0 : index
      %17 = vector.load %arg6[%c0_15, %c0_16, %c0_17] : memref<1x62x128xf32, #tpu.memory_space<vmem>>, vector<1x62x128xf32>
      tpu.vector_store %arg6[%c0_15, %c0_16, %c0_17], %15 {strides = array<i32>} : memref<1x62x128xf32, #tpu.memory_space<vmem>>, vector<1x62x128xf32>,
      %c0_18 = arith.constant 0 : index
      %c0_19 = arith.constant 0 : index
      %c0_20 = arith.constant 0 : index
      %18 = vector.load %arg7[%c0_18, %c0_19, %c0_20] : memref<1x62x128xf32, #tpu.memory_space<vmem>>, vector<1x62x128xf32>
      tpu.vector_store %arg7[%c0_18, %c0_19, %c0_20], %16 {strides = array<i32>} : memref<1x62x128xf32, #tpu.memory_space<vmem>>, vector<1x62x128xf32>,
    } else {
    }
    %c0_i32_3 = arith.constant 0 : i32
    %6 = arith.cmpi eq, %arg1, %c0_i32_3 : i32
    %7 = arith.extui %6 : i1 to i32
    %c0_i32_4 = arith.constant 0 : i32
    %8 = arith.cmpi ne, %7, %c0_i32_4 : i32
    scf.if %8 {
      %c0 = arith.constant 0 : index
      %c0_7 = arith.constant 0 : index
      %c0_8 = arith.constant 0 : index
      %12 = vector.load %arg6[%c0, %c0_7, %c0_8] : memref<1x62x128xf32, #tpu.memory_space<vmem>>, vector<1x62x128xf32>
      %c0_9 = arith.constant 0 : index
      %c0_10 = arith.constant 0 : index
      %c0_11 = arith.constant 0 : index
      %13 = vector.load %arg7[%c0_9, %c0_10, %c0_11] : memref<1x62x128xf32, #tpu.memory_space<vmem>>, vector<1x62x128xf32>
      %c0_12 = arith.constant 0 : index
      %c0_13 = arith.constant 0 : index
      %c0_14 = arith.constant 0 : index
      %14 = vector.load %arg2[%c0_12, %c0_13, %c0_14] : memref<1x62x128xf32, #tpu.memory_space<vmem>>, vector<1x62x128xf32>
      %15 = tpu.iota {dimensions = array<i32: 2>} : vector<1x62x128xi32>
      %c16_i32 = arith.constant 16 : i32
      %16 = vector.broadcast %c16_i32 : i32 to vector<1x62x128xi32>
      %17 = arith.cmpi slt, %15, %16 : vector<1x62x128xi32>
      %cst = arith.constant 0.000000e+00 : f32
      %18 = vector.broadcast %cst : f32 to vector<1x62x128xf32>
      %19 = arith.select %17, %14, %18 : vector<1x62x128xi1>, vector<1x62x128xf32>
      %20 = arith.addf %12, %19 : vector<1x62x128xf32>
      %cst_15 = arith.constant 0xFF800000 : f32
      %21 = vector.broadcast %cst_15 : f32 to vector<1x62x128xf32>
      %22 = arith.select %17, %14, %21 : vector<1x62x128xi1>, vector<1x62x128xf32>
      %23 = arith.maximumf %13, %22 : vector<1x62x128xf32>
      %c0_16 = arith.constant 0 : index
      %c0_17 = arith.constant 0 : index
      %c0_18 = arith.constant 0 : index
      %24 = vector.load %arg6[%c0_16, %c0_17, %c0_18] : memref<1x62x128xf32, #tpu.memory_space<vmem>>, vector<1x62x128xf32>
      tpu.vector_store %arg6[%c0_16, %c0_17, %c0_18], %20 {strides = array<i32>} : memref<1x62x128xf32, #tpu.memory_space<vmem>>, vector<1x62x128xf32>,
      %c0_19 = arith.constant 0 : index
      %c0_20 = arith.constant 0 : index
      %c0_21 = arith.constant 0 : index
      %25 = vector.load %arg7[%c0_19, %c0_20, %c0_21] : memref<1x62x128xf32, #tpu.memory_space<vmem>>, vector<1x62x128xf32>
      tpu.vector_store %arg7[%c0_19, %c0_20, %c0_21], %23 {strides = array<i32>} : memref<1x62x128xf32, #tpu.memory_space<vmem>>, vector<1x62x128xf32>,
    } else {
    }
    %c0_i32_5 = arith.constant 0 : i32
    %9 = arith.cmpi eq, %arg1, %c0_i32_5 : i32
    %10 = arith.extui %9 : i1 to i32
    %c0_i32_6 = arith.constant 0 : i32
    %11 = arith.cmpi ne, %10, %c0_i32_6 : i32
    scf.if %11 {
      %c0 = arith.constant 0 : index
      %c0_7 = arith.constant 0 : index
      %c0_8 = arith.constant 0 : index
      %12 = vector.load %arg6[%c0, %c0_7, %c0_8] : memref<1x62x128xf32, #tpu.memory_space<vmem>>, vector<1x62x128xf32>
      %cst = arith.constant dense<0.000000e+00> : vector<1x62xf32>
      %13 = vector.multi_reduction <add>, %12, %cst [2] : vector<1x62x128xf32> to vector<1x62xf32>
      %cst_9 = arith.constant 6.250000e-02 : f32
      %14 = vector.broadcast %cst_9 : f32 to vector<1x62xf32>
      %15 = arith.mulf %13, %14 : vector<1x62xf32>
      %c0_10 = arith.constant 0 : index
      %c0_11 = arith.constant 0 : index
      %c0_12 = arith.constant 0 : index
      %16 = vector.load %arg7[%c0_10, %c0_11, %c0_12] : memref<1x62x128xf32, #tpu.memory_space<vmem>>, vector<1x62x128xf32>
      %cst_13 = arith.constant dense<0xFF800000> : vector<1x62xf32>
      %17 = vector.multi_reduction <maximumf>, %16, %cst_13 [2] : vector<1x62x128xf32> to vector<1x62xf32>
      %18 = tpu.concatenate %15, %17 in 0 : vector<1x62xf32>, vector<1x62xf32> -> vector<2x62xf32>
      %c0_14 = arith.constant 0 : index
      %c0_15 = arith.constant 0 : index
      %19 = vector.load %arg3[%c0_14, %c0_15] : memref<62x3xf32, #tpu.memory_space<vmem>>, vector<62x3xf32>
      %c0_16 = arith.constant 0 : index
      %c0_17 = arith.constant 0 : index
      %20 = vector.load %arg4[%c0_16, %c0_17] : memref<3x62xf32, #tpu.memory_space<vmem>>, vector<3x62xf32>
      %cst_18 = arith.constant dense<0.000000e+00> : vector<2x3xf32>
      %21 = tpu.matmul %18, %19, %cst_18 {dimension_numbers = #tpu.dot_dimension_numbers<[1], [0], [0], [1], [0, 0, 1, 1], [], []>} : vector<2x62xf32>, vector<62x3xf32>, vector<2x3xf32> -> vector<2x3xf32>
      %cst_19 = arith.constant 0.000000e+00 : f32
      %22 = vector.broadcast %cst_19 : f32 to vector<2x3xf32>
      %23 = arith.maximumf %21, %22 : vector<2x3xf32>
      %cst_20 = arith.constant dense<0.000000e+00> : vector<2x62xf32>
      %24 = tpu.matmul %23, %20, %cst_20 {dimension_numbers = #tpu.dot_dimension_numbers<[1], [0], [0], [1], [0, 0, 1, 1], [], []>} : vector<2x3xf32>, vector<3x62xf32>, vector<2x62xf32> -> vector<2x62xf32>
      %25 = vector.extract_strided_slice %24 {offsets = [0, 0], sizes = [1, 62], strides = [1, 1]} : vector<2x62xf32> to vector<1x62xf32>
      %26 = vector.extract_strided_slice %24 {offsets = [1, 0], sizes = [1, 62], strides = [1, 1]} : vector<2x62xf32> to vector<1x62xf32>
      %27 = arith.addf %25, %26 : vector<1x62xf32>
      %28 = arith.negf %27 : vector<1x62xf32>
      %29 = math.exp %28 : vector<1x62xf32>
      %cst_21 = arith.constant 1.000000e+00 : f32
      %30 = vector.broadcast %cst_21 : f32 to vector<1x62xf32>
      %31 = arith.addf %30, %29 : vector<1x62xf32>
      %32 = arith.divf %30, %31 : vector<1x62xf32>
      %33 = vector.shape_cast %32 : vector<1x62xf32> to vector<1x1x62xf32>
      %c0_22 = arith.constant 0 : index
      %c0_23 = arith.constant 0 : index
      %c0_24 = arith.constant 0 : index
      %34 = vector.load %arg5[%c0_22, %c0_23, %c0_24] : memref<1x1x62xf32, #tpu.memory_space<vmem>>, vector<1x1x62xf32>
      tpu.vector_store %arg5[%c0_22, %c0_23, %c0_24], %33 {strides = array<i32>} : memref<1x1x62xf32, #tpu.memory_space<vmem>>, vector<1x1x62xf32>,
    } else {
    }
    return
  }
  func.func @transform_0(%arg0: i32, %arg1: i32) -> (i32, i32, i32) {
    %c0_i32 = arith.constant 0 : i32
    %c0_i32_0 = arith.constant 0 : i32
    return %arg0, %c0_i32, %arg1 : i32, i32, i32
  }
  func.func @transform_1(%arg0: i32, %arg1: i32) -> (i32, i32) {
    %c0_i32 = arith.constant 0 : i32
    %c0_i32_0 = arith.constant 0 : i32
    %c0_i32_1 = arith.constant 0 : i32
    return %c0_i32, %c0_i32_0 : i32, i32
  }
  func.func @transform_2(%arg0: i32, %arg1: i32) -> (i32, i32) {
    %c0_i32 = arith.constant 0 : i32
    %c0_i32_0 = arith.constant 0 : i32
    %c0_i32_1 = arith.constant 0 : i32
    return %c0_i32, %c0_i32_0 : i32, i32
  }
  func.func @transform_3(%arg0: i32, %arg1: i32) -> (i32, i32, i32) {
    %c0_i32 = arith.constant 0 : i32
    %c0_i32_0 = arith.constant 0 : i32
    %c0_i32_1 = arith.constant 0 : i32
    return %arg0, %c0_i32, %c0_i32_0 : i32, i32, i32
  }
}

</mosaic_0001>

<llo_original>
// kernel: tpu_custom_call.1
$region0: #{tpu_custom_call.1}
  #allocation0 [shape = 'u32[]', space=smem, size = 0x4, offset = 0x4, fixed_abs, tag = 'smem constant byte address 0x4 - core index']
  #allocation1 [shape = 'u32[72,128]{1,0:T(1,128)}', space=vmem, size = 0x9000, scoped, tag = 'internal scratch']
  #allocation2 [shape = 'f32[1,62,128]{2,1,0:T(8,128)}', space=vmem, size = 0x8000, scoped, tag = 'scratch operand']
  #allocation3 [shape = 'f32[1,62,128]{2,1,0:T(8,128)}', space=vmem, size = 0x8000, scoped, tag = 'scratch operand']
  %s0 = inlined_call_operand.vmem [shape: f32[2,62,16], index: 0, kind: input, shape index: {}]
  %s1 = inlined_call_operand.vmem [shape: f32[62,3], index: 1, kind: input, shape index: {}]
  %s2 = inlined_call_operand.vmem [shape: f32[3,62], index: 2, kind: input, shape index: {}]
  %s3 = inlined_call_operand.hbm [shape: f32[2,1,62], index: 3, kind: output, shape index: {}]
  %s4 = sld [smem:[#allocation0]]
  $region57: #{tpu_custom_call.1} parent=0
    _
  %s6 = ssub.s32 1, %s4
  %s7 = scalar_select 0, %s6, %s4
  $region1: #{tpu_custom_call.1} parent=0
    #allocation4 [shape = 'u8[1024]{0}', space=vmem, size = 0x400, scoped, tag = 'output window, operand 0']
    #allocation5 [shape = 's32[2]{0}', space=sflag, size = 0x8, scoped, tag = 'scoped memory for tpu_custom_call.1']
    %8 = vsyncpa [#allocation5], 0
    %s9 = scalar_lea.sflag [#allocation5], 1
    %10 = vsyncpa %s9, 0
    loop: start=0, step=1, limit=4
    $region2: #{tpu_custom_call.1} parent=1 // loop_pre_header
      _
    $region3: #{tpu_custom_call.1} parent=1 // loop_header
      %s12 = sphi 0, %s16
      %p13 = scmp.ge.s32.totalorder %s12, 4
      %s19 = sphi 0, %s31
      %s20 = sphi 0, %s27
      %s21 = sphi 0, %s19
      %s22 = sphi 0, %s20
      %s23 = sphi 0, %s21
      %s24 = sphi 0, %s22
      %s36 = sphi 0, %s38
      %s39 = sphi 0, %s36
      %s40 = sphi 0, %s39
      %s56 = sphi 0, %s40
      %s60 = sphi 0, %s60
      %s62 = sphi 0, %s60
      %s63 = sphi 0, %s62
      %s77 = sphi 0, %s63
      %s81 = sphi 0, %s81
      %s83 = sphi 0, %s81
      %s84 = sphi 0, %s83
      %s98 = sphi 0, %s84
      %s104 = sphi 0, %s106
      %s107 = sphi 0, %s104
      %s108 = sphi 0, %s107
      %s124 = sphi 0, %s108
    $region4: #{tpu_custom_call.1} parent=1 // loop_header_branch
      %15 = sbr.rel (%p13) target = $region8
    $region5: #{tpu_custom_call.1} parent=1 // loop_body
      %s17 = ssub.s32 %s12, 1
      %s18 = ssub.s32 %s12, 2
      %s25 = sadd.s32 1, %s20
      %p26 = scmp.ge.s32.totalorder %s25, 1
      %s27 = scalar_select %p26, 0, %s25
      %s28 = sadd.s32 1, %s19
      %s29 = scalar_select %p26, %s28, %s19
      %p30 = scmp.ge.s32.totalorder %s29, 2
      %s31 = scalar_select %p30, 0, %s29
      %s32 = ssub.s32 %s19, %s31
      %s33 = ssub.s32 %s20, %s27
      %s34 = sor.u32 %s32, %s33
      %p35 = scmp.eq.s32.totalorder %s34, 0
      %s37 = sadd.s32 %s36, 1
      %s38 = scalar_select %p35, %s36, %s37
      %p41 = pneg %p35
      %p42 = scmp.eq.s32.totalorder %s12, 1
      %p43 = por %p41, %p42
      %p44 = scmp.ne.s32.totalorder %s36, %s39
      %p45 = scmp.eq.s32.totalorder %s12, 0
      %p46 = por %p44, %p45
      %p47 = scmp.ne.s32.totalorder %s36, %s39
      %p48 = scmp.eq.s32.totalorder %s17, 1
      %p49 = por %p47, %p48
      %p50 = scmp.ne.s32.totalorder %s39, %s40
      %p51 = scmp.eq.s32.totalorder %s17, 0
      %p52 = por %p50, %p51
      %p53 = scmp.ne.s32.totalorder %s39, %s40
      %p54 = scmp.eq.s32.totalorder %s18, 1
      %p55 = por %p53, %p54
      %p57 = scmp.ne.s32.totalorder %s40, %s56
      %p58 = scmp.eq.s32.totalorder %s18, 0
      %p59 = por %p57, %p58
      %s61 = sadd.s32 %s60, 1
      %p64 = scmp.eq.s32.totalorder %s12, 1
      %p65 = scmp.ne.s32.totalorder %s60, %s62
      %p66 = scmp.eq.s32.totalorder %s12, 0
      %p67 = por %p65, %p66
      %p68 = scmp.ne.s32.totalorder %s60, %s62
      %p69 = scmp.eq.s32.totalorder %s17, 1
      %p70 = por %p68, %p69
      %p71 = scmp.ne.s32.totalorder %s62, %s63
      %p72 = scmp.eq.s32.totalorder %s17, 0
      %p73 = por %p71, %p72
      %p74 = scmp.ne.s32.totalorder %s62, %s63
      %p75 = scmp.eq.s32.totalorder %s18, 1
      %p76 = por %p74, %p75
      %p78 = scmp.ne.s32.totalorder %s63, %s77
      %p79 = scmp.eq.s32.totalorder %s18, 0
      %p80 = por %p78, %p79
      %s82 = sadd.s32 %s81, 1
      %p85 = scmp.eq.s32.totalorder %s12, 1
      %p86 = scmp.ne.s32.totalorder %s81, %s83
      %p87 = scmp.eq.s32.totalorder %s12, 0
      %p88 = por %p86, %p87
      %p89 = scmp.ne.s32.totalorder %s81, %s83
      %p90 = scmp.eq.s32.totalorder %s17, 1
      %p91 = por %p89, %p90
      %p92 = scmp.ne.s32.totalorder %s83, %s84
      %p93 = scmp.eq.s32.totalorder %s17, 0
      %p94 = por %p92, %p93
      %p95 = scmp.ne.s32.totalorder %s83, %s84
      %p96 = scmp.eq.s32.totalorder %s18, 1
      %p97 = por %p95, %p96
      %p99 = scmp.ne.s32.totalorder %s84, %s98
      %p100 = scmp.eq.s32.totalorder %s18, 0
      %p101 = por %p99, %p100
      %s102 = ssub.s32 %s19, %s31
      %p103 = scmp.eq.s32.totalorder %s102, 0
      %s105 = sadd.s32 %s104, 1
      %s106 = scalar_select %p103, %s104, %s105
      %p109 = pneg %p103
      %p110 = scmp.eq.s32.totalorder %s12, 1
      %p111 = por %p109, %p110
      %p112 = scmp.ne.s32.totalorder %s104, %s107
      %p113 = scmp.eq.s32.totalorder %s12, 0
      %p114 = por %p112, %p113
      %p115 = scmp.ne.s32.totalorder %s104, %s107
      %p116 = scmp.eq.s32.totalorder %s17, 1
      %p117 = por %p115, %p116
      %p118 = scmp.ne.s32.totalorder %s107, %s108
      %p119 = scmp.eq.s32.totalorder %s17, 0
      %p120 = por %p118, %p119
      %p121 = scmp.ne.s32.totalorder %s107, %s108
      %p122 = scmp.eq.s32.totalorder %s18, 1
      %p123 = por %p121, %p122
      %p125 = scmp.ne.s32.totalorder %s108, %s124
      %p126 = scmp.eq.s32.totalorder %s18, 0
      %p127 = por %p125, %p126
      %p128 = scmp.le.s32.totalorder 1, %s12
      %p129 = scmp.lt.s32.totalorder %s12, 3
      %p130 = pnand %p128, %p129
      %p131 = pneg %p130
      // Predicated region
      $region9: #{tpu_custom_call.1} parent=5 // pred_check
        _
      $region10: #{tpu_custom_call.1} parent=5 // pred_check_branch
        %133 = sbr.rel (%p130) target = $region12
      $region11: #{tpu_custom_call.1} parent=5 // pred_region
        %s134 = ssub.s32 %s12, 1
        // Predicated region
        $region13: #{tpu_custom_call.1} parent=11 // pred_check
          %p135 = pneg %p73
        $region14: #{tpu_custom_call.1} parent=11 // pred_check_branch
          %137 = sbr.rel (%p135) target = $region16
        $region15: #{tpu_custom_call.1} parent=11 // pred_region
          _
        $region16: #{tpu_custom_call.1} parent=11 // pred_fallthru
          _
        // Predicated region
        $region17: #{tpu_custom_call.1} parent=11 // pred_check
          %p138 = pneg %p94
        $region18: #{tpu_custom_call.1} parent=11 // pred_check_branch
          %140 = sbr.rel (%p138) target = $region20
        $region19: #{tpu_custom_call.1} parent=11 // pred_region
          _
        $region20: #{tpu_custom_call.1} parent=11 // pred_fallthru
          _
      $region12: #{tpu_custom_call.1} parent=5 // pred_fallthru
        _
      %p141 = scmp.lt.s32.totalorder %s12, 2
      // Predicated region
      $region21: #{tpu_custom_call.1} parent=5 // pred_check
        %p142 = pneg %p141
      $region22: #{tpu_custom_call.1} parent=5 // pred_check_branch
        %144 = sbr.rel (%p142) target = $region24
      $region23: #{tpu_custom_call.1} parent=5 // pred_region
        // Predicated region
        $region25: #{tpu_custom_call.1} parent=23 // pred_check
          %p145 = pneg %p46
        $region26: #{tpu_custom_call.1} parent=23 // pred_check_branch
          %147 = sbr.rel (%p145) target = $region28
        $region27: #{tpu_custom_call.1} parent=23 // pred_region
          %p148 = scmp.lt.s32.totalorder %s19, 1
          %s149 = scalar_select %p148, %s19, 1
          %p150 = scmp.lt.s32.totalorder %s20, 0
          %s151 = scalar_select %p150, %s20, 0
          %s152 = smul.addr %s149, 8
          %s153 = sadd.s32 %s151, %s152
          %s154 = smul.addr %s153, 8
          %s155 = scalar_lea.vmem %s0, %s154
        $region28: #{tpu_custom_call.1} parent=23 // pred_fallthru
          _
      $region24: #{tpu_custom_call.1} parent=5 // pred_fallthru
        _
      %p156 = scmp.le.s32.totalorder 1, %s12
      %p157 = scmp.lt.s32.totalorder %s12, 3
      %p158 = pnand %p156, %p157
      %p159 = pneg %p158
      // Predicated region
      $region29: #{tpu_custom_call.1} parent=5 // pred_check
        _
      $region30: #{tpu_custom_call.1} parent=5 // pred_check_branch
        %161 = sbr.rel (%p158) target = $region32
      $region31: #{tpu_custom_call.1} parent=5 // pred_region
        %s162 = ssub.s32 %s12, 1
        %p163 = scmp.lt.s32.totalorder %s21, 1
        %s164 = scalar_select %p163, %s21, 1
        %p165 = scmp.lt.s32.totalorder %s22, 0
        %s166 = scalar_select %p165, %s22, 0
        %s167 = smul.addr %s164, 8
        %s168 = sadd.s32 %s166, %s167
        %s169 = smul.addr %s168, 8
        %s170 = scalar_lea.vmem %s0, %s169
        %p171 = pneg %p52
        %p172 = pneg %p49
        %p173 = pneg %p73
        %p174 = pneg %p70
        %p175 = pneg %p94
        %p176 = pneg %p91
        %p177 = pneg %p120
        %p178 = pneg %p117
        %s179 = sand.u32 %s107, 1
        %s180 = scalar_lea.sflag [#allocation5], %s179
        %s181 = sand.u32 %s107, 1
        %s182 = scalar_lea.vmem [#allocation4], %s181
        %p183 = scmp.lt.s32.totalorder %s21, 1
        %s184 = scalar_select %p183, %s21, 1
        %p185 = scmp.lt.s32.totalorder %s22, 0
        %s186 = scalar_select %p185, %s22, 0
        %s187 = smul.addr %s184, 8
        %s188 = sadd.s32 %s186, %s187
        %s189 = smul.addr %s188, 8
        %s190 = scalar_lea.vmem %s0, %s189
        %p191 = scmp.eq.s32.totalorder %s22, 0
        // Predicated region
        $region33: #{tpu_custom_call.1} parent=31 // pred_check
          %p192 = pneg %p191
        $region34: #{tpu_custom_call.1} parent=31 // pred_check_branch
          %194 = sbr.rel (%p192) target = $region36
        $region35: #{tpu_custom_call.1} parent=31 // pred_region
          %195 = vst [vmem:[#allocation2] sm:$0xff] 0.0
          %196 = vst [vmem:[#allocation2 + $0x8] sm:$0xff] 0.0
          %197 = vst [vmem:[#allocation2 + $0x10] sm:$0xff] 0.0
          %198 = vst [vmem:[#allocation2 + $0x18] sm:$0xff] 0.0
          %199 = vst [vmem:[#allocation2 + $0x20] sm:$0xff] 0.0
          %200 = vst [vmem:[#allocation2 + $0x28] sm:$0xff] 0.0
          %201 = vst [vmem:[#allocation2 + $0x30] sm:$0xff] 0.0
          %202 = vst [vmem:[#allocation2 + $0x38] sm:$0x3f] 0.0
          %203 = vst [vmem:[#allocation3] sm:$0xff] -inf
          %204 = vst [vmem:[#allocation3 + $0x8] sm:$0xff] -inf
          %205 = vst [vmem:[#allocation3 + $0x10] sm:$0xff] -inf
          %206 = vst [vmem:[#allocation3 + $0x18] sm:$0xff] -inf
          %207 = vst [vmem:[#allocation3 + $0x20] sm:$0xff] -inf
          %208 = vst [vmem:[#allocation3 + $0x28] sm:$0xff] -inf
          %209 = vst [vmem:[#allocation3 + $0x30] sm:$0xff] -inf
          %210 = vst [vmem:[#allocation3 + $0x38] sm:$0x3f] -inf
        $region36: #{tpu_custom_call.1} parent=31 // pred_fallthru
          _
        %p211 = scmp.lt.s32.totalorder %s22, 0
        // Predicated region
        $region37: #{tpu_custom_call.1} parent=31 // pred_check
          %p212 = pneg %p211
        $region38: #{tpu_custom_call.1} parent=31 // pred_check_branch
          %214 = sbr.rel (%p212) target = $region40
        $region39: #{tpu_custom_call.1} parent=31 // pred_region
          %v215 = vld [vmem:[#allocation2] sm:$0xff]
          %v216 = vld [vmem:[#allocation2 + $0x8] sm:$0xff]
          %v217 = vld [vmem:[#allocation2 + $0x10] sm:$0xff]
          %v218 = vld [vmem:[#allocation2 + $0x18] sm:$0xff]
          %v219 = vld [vmem:[#allocation2 + $0x20] sm:$0xff]
          %v220 = vld [vmem:[#allocation2 + $0x28] sm:$0xff]
          %v221 = vld [vmem:[#allocation2 + $0x30] sm:$0xff]
          %v222 = vld [vmem:[#allocation2 + $0x38] sm:$0x3f]
          %v223 = vld [vmem:[#allocation3] sm:$0xff]
          %v224 = vld [vmem:[#allocation3 + $0x8] sm:$0xff]
          %v225 = vld [vmem:[#allocation3 + $0x10] sm:$0xff]
          %v226 = vld [vmem:[#allocation3 + $0x18] sm:$0xff]
          %v227 = vld [vmem:[#allocation3 + $0x20] sm:$0xff]
          %v228 = vld [vmem:[#allocation3 + $0x28] sm:$0xff]
          %v229 = vld [vmem:[#allocation3 + $0x30] sm:$0xff]
          %v230 = vld [vmem:[#allocation3 + $0x38] sm:$0x3f]
          %v231 = vld [vmem:[%s190] sm:$0xff]
          %v232 = vld [vmem:[%s190 + $0x8] sm:$0xff]
          %v233 = vld [vmem:[%s190 + $0x10] sm:$0xff]
          %v234 = vld [vmem:[%s190 + $0x18] sm:$0xff]
          %v235 = vld [vmem:[%s190 + $0x20] sm:$0xff]
          %v236 = vld [vmem:[%s190 + $0x28] sm:$0xff]
          %v237 = vld [vmem:[%s190 + $0x30] sm:$0xff]
          %v238 = vld [vmem:[%s190 + $0x38] sm:$0x3f]
          %v239 = vadd.f32 %v215, %v231
          %v240 = vadd.f32 %v216, %v232
          %v241 = vadd.f32 %v217, %v233
          %v242 = vadd.f32 %v218, %v234
          %v243 = vadd.f32 %v219, %v235
          %v244 = vadd.f32 %v220, %v236
          %v245 = vadd.f32 %v221, %v237
          %v246 = vadd.f32 %v222, %v238
          %v247 = vmax.f32 %v223, %v231
          %v248 = vmax.f32 %v224, %v232
          %v249 = vmax.f32 %v225, %v233
          %v250 = vmax.f32 %v226, %v234
          %v251 = vmax.f32 %v227, %v235
          %v252 = vmax.f32 %v228, %v236
          %v253 = vmax.f32 %v229, %v237
          %v254 = vmax.f32 %v230, %v238
          %255 = vst [vmem:[#allocation2] sm:$0xff] %v239
          %256 = vst [vmem:[#allocation2 + $0x8] sm:$0xff] %v240
          %257 = vst [vmem:[#allocation2 + $0x10] sm:$0xff] %v241
          %258 = vst [vmem:[#allocation2 + $0x18] sm:$0xff] %v242
          %259 = vst [vmem:[#allocation2 + $0x20] sm:$0xff] %v243
          %260 = vst [vmem:[#allocation2 + $0x28] sm:$0xff] %v244
          %261 = vst [vmem:[#allocation2 + $0x30] sm:$0xff] %v245
          %262 = vst [vmem:[#allocation2 + $0x38] sm:$0x3f] %v246
          %263 = vst [vmem:[#allocation3] sm:$0xff] %v247
          %264 = vst [vmem:[#allocation3 + $0x8] sm:$0xff] %v248
          %265 = vst [vmem:[#allocation3 + $0x10] sm:$0xff] %v249
          %266 = vst [vmem:[#allocation3 + $0x18] sm:$0xff] %v250
          %267 = vst [vmem:[#allocation3 + $0x20] sm:$0xff] %v251
          %268 = vst [vmem:[#allocation3 + $0x28] sm:$0xff] %v252
          %269 = vst [vmem:[#allocation3 + $0x30] sm:$0xff] %v253
          %270 = vst [vmem:[#allocation3 + $0x38] sm:$0x3f] %v254
        $region40: #{tpu_custom_call.1} parent=31 // pred_fallthru
          _
        // Predicated region
        $region41: #{tpu_custom_call.1} parent=31 // pred_check
          %p271 = pneg %p191
        $region42: #{tpu_custom_call.1} parent=31 // pred_check_branch
          %273 = sbr.rel (%p271) target = $region44
        $region43: #{tpu_custom_call.1} parent=31 // pred_region
          %v274 = vld [vmem:[#allocation2] sm:$0xff]
          %v275 = vld [vmem:[#allocation2 + $0x8] sm:$0xff]
          %v276 = vld [vmem:[#allocation2 + $0x10] sm:$0xff]
          %v277 = vld [vmem:[#allocation2 + $0x18] sm:$0xff]
          %v278 = vld [vmem:[#allocation2 + $0x20] sm:$0xff]
          %v279 = vld [vmem:[#allocation2 + $0x28] sm:$0xff]
          %v280 = vld [vmem:[#allocation2 + $0x30] sm:$0xff]
          %v281 = vld [vmem:[#allocation2 + $0x38] sm:$0x3f]
          %v282 = vld [vmem:[#allocation3] sm:$0xff]
          %v283 = vld [vmem:[#allocation3 + $0x8] sm:$0xff]
          %v284 = vld [vmem:[#allocation3 + $0x10] sm:$0xff]
          %v285 = vld [vmem:[#allocation3 + $0x18] sm:$0xff]
          %v286 = vld [vmem:[#allocation3 + $0x20] sm:$0xff]
          %v287 = vld [vmem:[#allocation3 + $0x28] sm:$0xff]
          %v288 = vld [vmem:[#allocation3 + $0x30] sm:$0xff]
          %v289 = vld [vmem:[#allocation3 + $0x38] sm:$0x3f]
          %v290 = vld [vmem:[%s190] sm:$0xff]
          %v291 = vld [vmem:[%s190 + $0x8] sm:$0xff]
          %v292 = vld [vmem:[%s190 + $0x10] sm:$0xff]
          %v293 = vld [vmem:[%s190 + $0x18] sm:$0xff]
          %v294 = vld [vmem:[%s190 + $0x20] sm:$0xff]
          %v295 = vld [vmem:[%s190 + $0x28] sm:$0xff]
          %v296 = vld [vmem:[%s190 + $0x30] sm:$0xff]
          %v297 = vld [vmem:[%s190 + $0x38] sm:$0x3f]
          %v298 = vlaneseq
          %v299 = vand.u32 %v298, 127
          %vm300 = vcmp.lt.s32.totalorder %v299, 16
          %v301 = vsel %vm300, %v290, 0.0
          %v302 = vsel %vm300, %v291, 0.0
          %v303 = vsel %vm300, %v292, 0.0
          %v304 = vsel %vm300, %v293, 0.0
          %v305 = vsel %vm300, %v294, 0.0
          %v306 = vsel %vm300, %v295, 0.0
          %v307 = vsel %vm300, %v296, 0.0
          %v308 = vsel %vm300, %v297, 0.0
          %v309 = vadd.f32 %v274, %v301
          %v310 = vadd.f32 %v275, %v302
          %v311 = vadd.f32 %v276, %v303
          %v312 = vadd.f32 %v277, %v304
          %v313 = vadd.f32 %v278, %v305
          %v314 = vadd.f32 %v279, %v306
          %v315 = vadd.f32 %v280, %v307
          %v316 = vadd.f32 %v281, %v308
          %v317 = vsel %vm300, %v290, -inf
          %v318 = vsel %vm300, %v291, -inf
          %v319 = vsel %vm300, %v292, -inf
          %v320 = vsel %vm300, %v293, -inf
          %v321 = vsel %vm300, %v294, -inf
          %v322 = vsel %vm300, %v295, -inf
          %v323 = vsel %vm300, %v296, -inf
          %v324 = vsel %vm300, %v297, -inf
          %v325 = vmax.f32 %v282, %v317
          %v326 = vmax.f32 %v283, %v318
          %v327 = vmax.f32 %v284, %v319
          %v328 = vmax.f32 %v285, %v320
          %v329 = vmax.f32 %v286, %v321
          %v330 = vmax.f32 %v287, %v322
          %v331 = vmax.f32 %v288, %v323
          %v332 = vmax.f32 %v289, %v324
          %333 = vst [vmem:[#allocation2] sm:$0xff] %v309
          %334 = vst [vmem:[#allocation2 + $0x8] sm:$0xff] %v310
          %335 = vst [vmem:[#allocation2 + $0x10] sm:$0xff] %v311
          %336 = vst [vmem:[#allocation2 + $0x18] sm:$0xff] %v312
          %337 = vst [vmem:[#allocation2 + $0x20] sm:$0xff] %v313
          %338 = vst [vmem:[#allocation2 + $0x28] sm:$0xff] %v314
          %339 = vst [vmem:[#allocation2 + $0x30] sm:$0xff] %v315
          %340 = vst [vmem:[#allocation2 + $0x38] sm:$0x3f] %v316
          %341 = vst [vmem:[#allocation3] sm:$0xff] %v325
          %342 = vst [vmem:[#allocation3 + $0x8] sm:$0xff] %v326
          %343 = vst [vmem:[#allocation3 + $0x10] sm:$0xff] %v327
          %344 = vst [vmem:[#allocation3 + $0x18] sm:$0xff] %v328
          %345 = vst [vmem:[#allocation3 + $0x20] sm:$0xff] %v329
          %346 = vst [vmem:[#allocation3 + $0x28] sm:$0xff] %v330
          %347 = vst [vmem:[#allocation3 + $0x30] sm:$0xff] %v331
          %348 = vst [vmem:[#allocation3 + $0x38] sm:$0x3f] %v332
          %v349 = vld [vmem:[#allocation2] sm:$0xff]
          %v350 = vld [vmem:[#allocation2 + $0x8] sm:$0xff]
          %v351 = vld [vmem:[#allocation2 + $0x10] sm:$0xff]
          %v352 = vld [vmem:[#allocation2 + $0x18] sm:$0xff]
          %v353 = vld [vmem:[#allocation2 + $0x20] sm:$0xff]
          %v354 = vld [vmem:[#allocation2 + $0x28] sm:$0xff]
          %v355 = vld [vmem:[#allocation2 + $0x30] sm:$0xff]
          %v356 = vld [vmem:[#allocation2 + $0x38] sm:$0x3f]
          %357 = vadd.xlane.f32.xlu0 %v349
          %v358 = vpop.xlane.xlu0 %357
          %359 = vadd.xlane.f32.xlu0 %v350
          %v360 = vpop.xlane.xlu0 %359
          %361 = vadd.xlane.f32.xlu0 %v351
          %v362 = vpop.xlane.xlu0 %361
          %363 = vadd.xlane.f32.xlu0 %v352
          %v364 = vpop.xlane.xlu0 %363
          %365 = vadd.xlane.f32.xlu0 %v353
          %v366 = vpop.xlane.xlu0 %365
          %367 = vadd.xlane.f32.xlu0 %v354
          %v368 = vpop.xlane.xlu0 %367
          %369 = vadd.xlane.f32.xlu0 %v355
          %v370 = vpop.xlane.xlu0 %369
          %vm371 = vcmask 1045504
          %v372 = vsel %vm371, %v356, 0.0
          %373 = vadd.xlane.f32.xlu0 %v372
          %v374 = vpop.xlane.xlu0 %373
          %v375 = vmul.f32 %v358, 0.0625
          %v376 = vmul.f32 %v360, 0.0625
          %v377 = vmul.f32 %v362, 0.0625
          %v378 = vmul.f32 %v364, 0.0625
          %v379 = vmul.f32 %v366, 0.0625
          %v380 = vmul.f32 %v368, 0.0625
          %v381 = vmul.f32 %v370, 0.0625
          %v382 = vmul.f32 %v374, 0.0625
          %v383 = vld [vmem:[#allocation3] sm:$0xff]
          %v384 = vld [vmem:[#allocation3 + $0x8] sm:$0xff]
          %v385 = vld [vmem:[#allocation3 + $0x10] sm:$0xff]
          %v386 = vld [vmem:[#allocation3 + $0x18] sm:$0xff]
          %v387 = vld [vmem:[#allocation3 + $0x20] sm:$0xff]
          %v388 = vld [vmem:[#allocation3 + $0x28] sm:$0xff]
          %v389 = vld [vmem:[#allocation3 + $0x30] sm:$0xff]
          %v390 = vld [vmem:[#allocation3 + $0x38] sm:$0x3f]
          %391 = vmax.xlane.f32.xlu0 %v383
          %v392 = vpop.xlane.xlu0 %391
          %393 = vmax.xlane.f32.xlu0 %v384
          %v394 = vpop.xlane.xlu0 %393
          %395 = vmax.xlane.f32.xlu0 %v385
          %v396 = vpop.xlane.xlu0 %395
          %397 = vmax.xlane.f32.xlu0 %v386
          %v398 = vpop.xlane.xlu0 %397
          %399 = vmax.xlane.f32.xlu0 %v387
          %v400 = vpop.xlane.xlu0 %399
          %401 = vmax.xlane.f32.xlu0 %v388
          %v402 = vpop.xlane.xlu0 %401
          %403 = vmax.xlane.f32.xlu0 %v389
          %v404 = vpop.xlane.xlu0 %403
          %v405 = vsel %vm371, %v390, -inf
          %406 = vmax.xlane.f32.xlu0 %v405
          %v407 = vpop.xlane.xlu0 %406
          %v416 = vperm.slane %v375, %v299
          %v417 = vadd.s32 %v299, 4294967288
          %v418 = vperm.slane %v376, %v417
          %vm419 = vcmask 130112
          %v420 = vsel %vm419, %v418, %v416
          %v421 = vadd.s32 %v299, 4294967280
          %v422 = vperm.slane %v377, %v421
          %vm423 = vcmask 195712
          %v424 = vsel %vm423, %v422, %v420
          %v425 = vadd.s32 %v299, 4294967272
          %v426 = vperm.slane %v378, %v425
          %vm427 = vcmask 261312
          %v428 = vsel %vm427, %v426, %v424
          %v429 = vadd.s32 %v299, 4294967264
          %v430 = vperm.slane %v379, %v429
          %vm431 = vcmask 326912
          %v432 = vsel %vm431, %v430, %v428
          %v433 = vadd.s32 %v299, 4294967256
          %v434 = vperm.slane %v380, %v433
          %vm435 = vcmask 392512
          %v436 = vsel %vm435, %v434, %v432
          %v437 = vadd.s32 %v299, 4294967248
          %v438 = vperm.slane %v381, %v437
          %vm439 = vcmask 458112
          %v440 = vsel %vm439, %v438, %v436
          %v441 = vadd.s32 %v299, 4294967240
          %v442 = vperm.slane %v382, %v441
          %vm443 = vcmask 523712
          %v444 = vsel %vm443, %v442, %v440
          %v454 = vperm.slane %v392, %v299
          %v455 = vperm.slane %v394, %v417
          %v456 = vsel %vm419, %v455, %v454
          %v457 = vperm.slane %v396, %v421
          %v458 = vsel %vm423, %v457, %v456
          %v459 = vperm.slane %v398, %v425
          %v460 = vsel %vm427, %v459, %v458
          %v461 = vperm.slane %v400, %v429
          %v462 = vsel %vm431, %v461, %v460
          %v463 = vperm.slane %v402, %v433
          %v464 = vsel %vm435, %v463, %v462
          %v465 = vperm.slane %v404, %v437
          %v466 = vsel %vm439, %v465, %v464
          %v467 = vperm.slane %v407, %v441
          %v468 = vsel %vm443, %v467, %v466
          %vm470 = vcmask 1040384
          %v471 = vsel %vm470, %v444, %v468
          %v472 = vld [vmem:[%s1] sm:$0xff]
          %v473 = vld [vmem:[%s1 + $0x8] sm:$0xff]
          %v474 = vld [vmem:[%s1 + $0x10] sm:$0xff]
          %v475 = vld [vmem:[%s1 + $0x18] sm:$0xff]
          %v476 = vld [vmem:[%s1 + $0x20] sm:$0xff]
          %v477 = vld [vmem:[%s1 + $0x28] sm:$0xff]
          %v478 = vld [vmem:[%s1 + $0x30] sm:$0xff]
          %v479 = vld [vmem:[%s1 + $0x38] sm:$0x3f]
          %v480 = vld [vmem:[%s2] sm:$0x7]
          %vm481 = vcmask 506880
          %v483 = vsel %vm481, %v471, 0
          %v486 = vsel %vm371, %v479, 0
          %488 = vmatpush.msra.mxu0 0.0
          %489 = vmatpush.msra.mxu0 0.0
          %490 = vmatpush.msra.mxu0 0.0
          %491 = vmatpush.msra.mxu0 0.0
          %492 = vmatpush.msra.mxu0 0.0
          %493 = vmatpush.msra.mxu0 0.0
          %494 = vmatpush.msra.mxu0 0.0
          %495 = vmatpush.msra.mxu0 0.0
          %496 = vmatpush.msra.mxu0 %v486
          %497 = vmatpush.msra.mxu0 %v478
          %498 = vmatpush.msra.mxu0 %v477
          %499 = vmatpush.msra.mxu0 %v476
          %500 = vmatpush.msra.mxu0 %v475
          %501 = vmatpush.msra.mxu0 %v474
          %502 = vmatpush.msra.mxu0 %v473
          %503 = vmatpush.msra.mxu0 %v472
          %504 = vmatmul.f32.gmra.mxu0 %v483
          %v505 = vpop.f32.mrf.mxu0
          %v506 = vadd.f32 0.0, %v505
          %507 = vdwg.mxu0
          %v508 = vmax.f32 %v506, 0.0
          %vm509 = vcmask 23552
          %v511 = vsel %vm509, %v508, 0
          %vm513 = vcmask 1042432
          %v515 = vsel %vm513, %v480, 0
          %517 = vmatpush.msra.mxu0 0.0
          %518 = vmatpush.msra.mxu0 0.0
          %519 = vmatpush.msra.mxu0 0.0
          %520 = vmatpush.msra.mxu0 0.0
          %521 = vmatpush.msra.mxu0 0.0
          %522 = vmatpush.msra.mxu0 0.0
          %523 = vmatpush.msra.mxu0 0.0
          %524 = vmatpush.msra.mxu0 0.0
          %525 = vmatpush.msra.mxu0 0.0
          %526 = vmatpush.msra.mxu0 0.0
          %527 = vmatpush.msra.mxu0 0.0
          %528 = vmatpush.msra.mxu0 0.0
          %529 = vmatpush.msra.mxu0 0.0
          %530 = vmatpush.msra.mxu0 0.0
          %531 = vmatpush.msra.mxu0 0.0
          %532 = vmatpush.msra.mxu0 %v515
          %533 = vmatmul.f32.gmra.mxu0 %v511
          %v534 = vpop.f32.mrf.mxu0
          %v535 = vadd.f32 0.0, %v534
          %536 = vdwg.mxu0
          %v538 = vrot.slane %v535, 1
          %v540 = vadd.f32 %v535, %v538
          %v541 = vxor.u32 %v540, 2147483648
          %v542 = vmul.f32 %v541, 1.442695
          %v543 = vpow.pop %v542
          %v544 = vadd.f32 %v543, 1.0
          %v545 = vrcp.pop %v544
          %v546 = vmul.f32 %v544, %v545
          %v547 = vsub.f32 1.0, %v546
          %v548 = vmul.f32 %v545, %v547
          %v549 = vadd.f32 %v545, %v548
          %vm550 = vweird.f32 %v544
          %vm551 = vweird.f32 %v545
          %vm552 = vmor %vm550, %vm551
          %v553 = vsel %vm552, %v545, %v549
          %v554 = vand.u32 2147483647, %v544
          %vm555 = vcmp.eq.f32.partialorder %v554, 8.507059e+37
          %v556 = vand.u32 %v544, 2147483648
          %v557 = vor.u32 1.1754944e-38, %v556
          %v558 = vsel %vm555, %v557, %v553
          %v559 = vmul.f32 1.0, %v558
          %vm560 = vcmask 499712
          %561 = vst.msk [vmem:[%s182] sm:$0x1] %vm560, %v559
        $region44: #{tpu_custom_call.1} parent=31 // pred_fallthru
          _
        %s562 = sand.u32 %s107, 1
        %s563 = scalar_lea.sflag [#allocation5], %s562
        %s564 = sand.u32 %s107, 1
        %s565 = scalar_lea.vmem [#allocation4], %s564
        // Predicated region
        $region45: #{tpu_custom_call.1} parent=31 // pred_check
          %p566 = pneg %p117
        $region46: #{tpu_custom_call.1} parent=31 // pred_check_branch
          %568 = sbr.rel (%p566) target = $region48
        $region47: #{tpu_custom_call.1} parent=31 // pred_region
          %570 = vsyncadd %s563, 0
          %s571 = scalar_lea.hbm %s3, %s21
          %s573 = sshll.u32 %s565, 4
          %s574 = int_to_ptr.vmem [resolvable:$true] %s573
          %s575 = sshll.u32 %s571, 4
          %s576 = int_to_ptr.hbm [resolvable:$true] %s575
          %578 = dma.vmem_to_hbm [thread:$0]  %s574, 16, %s576, %s563
        $region48: #{tpu_custom_call.1} parent=31 // pred_fallthru
          _
      $region32: #{tpu_custom_call.1} parent=5 // pred_fallthru
        _
      %p579 = scmp.le.s32.totalorder 2, %s12
      // Predicated region
      $region49: #{tpu_custom_call.1} parent=5 // pred_check
        %p580 = pneg %p579
      $region50: #{tpu_custom_call.1} parent=5 // pred_check_branch
        %582 = sbr.rel (%p580) target = $region52
      $region51: #{tpu_custom_call.1} parent=5 // pred_region
        %s583 = ssub.s32 %s12, 2
        // Predicated region
        $region53: #{tpu_custom_call.1} parent=51 // pred_check
          %p584 = pneg %p123
        $region54: #{tpu_custom_call.1} parent=51 // pred_check_branch
          %586 = sbr.rel (%p584) target = $region56
        $region55: #{tpu_custom_call.1} parent=51 // pred_region
          %s587 = sand.u32 %s108, 1
          %s588 = scalar_lea.sflag [#allocation5], %s587
          %s589 = sand.u32 %s108, 1
          %s590 = scalar_lea.vmem [#allocation4], %s589
          %592 = dma.done %s588, 16
        $region56: #{tpu_custom_call.1} parent=51 // pred_fallthru
          _
      $region52: #{tpu_custom_call.1} parent=5 // pred_fallthru
        _
    $region6: #{tpu_custom_call.1} parent=1 // loop_footer
      %s16 = sadd.s32 1, %s12
    $region7: #{tpu_custom_call.1} parent=1 // loop_footer_branch
      %11 = sbr.rel target = $region3
    $region8: #{tpu_custom_call.1} parent=1 // loop_exit
      _
    %593 = vsyncpa [#allocation5], 1
    %s594 = scalar_lea.sflag [#allocation5], 1
    %595 = vsyncpa %s594, 1

</llo_original>
